<compile_context>
chip_gen: v5e
topology: v5e:2x2
jax: 0.10.0
libtpu: 0.0.40
codegen_flags: <defaults>
</compile_context>

<pallas_src>
import functools

import jax
import jax.numpy as jnp
from jax.experimental import pallas as pl
from jax.experimental.pallas import tpu as pltpu


def _round_up(x, m):
    return (x + m - 1) // m * m


_TM_LADDER = (2048, 1024, 512, 256)


def _pick_tm(B):
    """Batch tile: one big 8-aligned tile for small batches; for large batches
    the largest MXU-aligned (multiple of 256) tile whose padding waste stays
    bounded (~<= B/8)."""
    if B <= _TM_LADDER[0]:
        return _round_up(max(B, 1), 8)
    for tm in _TM_LADDER:
        pad = _round_up(B, tm) - B
        if pad <= max(B // 8, tm // 8):
            return tm
    return _TM_LADDER[-1]


def _vmem_cap_bytes():
    """Generation-aware VMEM ceiling: 75% of physical, conservative fallback."""
    try:
        return int(0.75 * pltpu.get_tpu_info().vmem_capacity_bytes)
    except Exception:
        return 48 * 1024 * 1024  # safe on v5e/v6e (128 MiB) and v7x (64 MiB)


def _dnn_single_kernel(x_ref, w1_ref, b1_ref, w2_ref, b2_ref, w3_ref, b3_ref,
                       o_ref):
    # Cast x f32 -> bf16 on the VPU inside the kernel (free filler under the
    # MXU); the HBM side only ever moves x once, as f32.
    x = x_ref[...].astype(jnp.bfloat16)
    # fc1 + relu  (bf16 matmul, f32 accumulate, f32 bias/ReLU)
    h1 = jnp.dot(x, w1_ref[...], preferred_element_type=jnp.float32)
    h1 = jnp.maximum(h1 + b1_ref[...], 0.0)
    # fc2 + relu
    h2 = jnp.dot(h1.astype(jnp.bfloat16), w2_ref[...],
                 preferred_element_type=jnp.float32)
    h2 = jnp.maximum(h2 + b2_ref[...], 0.0)
    # fc3_class + relu
    out = jnp.dot(h2.astype(jnp.bfloat16), w3_ref[...],
                  preferred_element_type=jnp.float32)
    out = jnp.maximum(out + b3_ref[...], 0.0)
    o_ref[...] = out.astype(o_ref.dtype)


@functools.partial(
    jax.jit, static_argnames=("input_dim", "output_dim_class", "out_dtype"))
def dnn_single_forward(x, params, *, input_dim, output_dim_class,
                       out_dtype=jnp.float32):
    """Forward pass of DNN_single.

    x: (B, input_dim) float32
    returns: (B, input_dim, output_dim_class) in `out_dtype` (default float32)
    """
    w1, b1, w2, b2, w3, b3 = params
    B = x.shape[0]
    out_flat_dim = input_dim * output_dim_class  # 16*8 = 128: lane-dense

    TM = _pick_tm(B)
    B_pad = _round_up(B, TM)

    # No wrapper-side cast of x (cast happens in-kernel); pad only if needed.
    x_p = x if B_pad == B else jnp.pad(x, ((0, B_pad - B), (0, 0)))
    # Weights/biases are tiny (<30K params) and VMEM-resident: cast once here.
    w1b = w1.astype(jnp.bfloat16)
    w2b = w2.astype(jnp.bfloat16)
    w3b = w3.astype(jnp.bfloat16)

    grid = (B_pad // TM,)

    out_bytes = jnp.dtype(out_dtype).itemsize
    # VMEM budget: double-buffered x/out tiles + resident weights + f32/bf16
    # intermediates, with headroom, clamped to the chip's physical capacity.
    tile_bytes = 2 * TM * (input_dim * 4 + out_flat_dim * out_bytes)
    inter_bytes = TM * (256 + 64 + out_flat_dim) * 6      # f32 + bf16 copies
    w_bytes = 2 * (w1.size + w2.size + w3.size) + 4 * (b1.size + b2.size + b3.size)
    vmem_limit = min(_vmem_cap_bytes(),
                     max(16 * 1024 * 1024,
                         4 * (tile_bytes + inter_bytes + w_bytes)))

    flops = 2 * B_pad * (input_dim * 256 + 256 * 64 + 64 * out_flat_dim)
    bytes_accessed = (B_pad * input_dim * 4                 # x (f32)
                      + 2 * (w1.size + w2.size + w3.size)   # bf16 weights
                      + 4 * (b1.size + b2.size + b3.size)   # f32 biases
                      + B_pad * out_flat_dim * out_bytes)   # output

    resident = lambda shape: pl.BlockSpec(shape, lambda i: tuple(0 for _ in shape))

    out_flat = pl.pallas_call(
        _dnn_single_kernel,
        out_shape=jax.ShapeDtypeStruct((B_pad, out_flat_dim), out_dtype),
        grid=grid,
        in_specs=[
            pl.BlockSpec((TM, input_dim), lambda i: (i, 0)),   # x: tiled over batch
            resident(w1b.shape), resident(b1.shape),           # weights/bias resident
            resident(w2b.shape), resident(b2.shape),
            resident(w3b.shape), resident(b3.shape),
        ],
        out_specs=pl.BlockSpec((TM, out_flat_dim), lambda i: (i, 0)),
        compiler_params=pltpu.CompilerParams(
            dimension_semantics=("parallel",),
            vmem_limit_bytes=int(vmem_limit)),
        cost_estimate=pl.CostEstimate(
            flops=int(flops), transcendentals=0,
            bytes_accessed=int(bytes_accessed)),
    )(x_p, w1b, b1, w2b, b2, w3b, b3)

    # Drop padded rows, then output_class.view(-1, input_dim, output_dim_class)
    return out_flat[:B].reshape(-1, input_dim, output_dim_class)


def init_params(key, input_dim, output_dim_class):
    """Deterministic init mimicking nn.Linear (uniform +/- 1/sqrt(fan_in)).

    Weights stored as (in_features, out_features)."""
    dims = [(input_dim, 256), (256, 64), (64, input_dim * output_dim_class)]
    params = []
    for (fan_in, fan_out) in dims:
        key, kw, kb = jax.random.split(key, 3)
        bound = 1.0 / jnp.sqrt(fan_in)
        w = jax.random.uniform(kw, (fan_in, fan_out), jnp.float32, -bound, bound)
        b = jax.random.uniform(kb, (1, fan_out), jnp.float32, -bound, bound)
        params += [w, b]
    return tuple(params)


def reference_forward(x, params, input_dim, output_dim_class):
    """Pure-JAX reference with the same bf16-matmul / f32-accumulate recipe."""
    w1, b1, w2, b2, w3, b3 = params
    xb = x.astype(jnp.bfloat16)
    h1 = jnp.maximum(
        jnp.dot(xb, w1.astype(jnp.bfloat16),
                preferred_element_type=jnp.float32) + b1, 0.0)
    h2 = jnp.maximum(
        jnp.dot(h1.astype(jnp.bfloat16), w2.astype(jnp.bfloat16),
                preferred_element_type=jnp.float32) + b2, 0.0)
    out = jnp.maximum(
        jnp.dot(h2.astype(jnp.bfloat16), w3.astype(jnp.bfloat16),
                preferred_element_type=jnp.float32) + b3, 0.0)
    return out.reshape(-1, input_dim, output_dim_class)


if __name__ == "__main__":
    input_dim = 16
    output_dim_class = 8
    batch = 2

    key = jax.random.PRNGKey(0)
    key, kx = jax.random.split(key)
    x = jax.random.normal(kx, (batch, input_dim), jnp.float32)
    params = init_params(key, input_dim, output_dim_class)

    out = dnn_single_forward(
        x, params, input_dim=input_dim, output_dim_class=output_dim_class)
    out = jax.block_until_ready(out)

    ref = reference_forward(x, params, input_dim, output_dim_class)
    assert out.shape == (batch, input_dim, output_dim_class), out.shape
    assert jnp.allclose(out, ref, atol=1e-2, rtol=1e-2), "mismatch vs reference"

    print("KERNEL_OK")
</pallas_src>

<mosaic_0001>
module attributes {stable_mosaic.version = 11 : i64} {
  func.func @_dnn_single_kernel(%arg0: i32, %arg1: memref<8x16xf32, #tpu.memory_space<vmem>>, %arg2: memref<16x256xbf16, #tpu.memory_space<vmem>>, %arg3: memref<1x256xf32, #tpu.memory_space<vmem>>, %arg4: memref<256x64xbf16, #tpu.memory_space<vmem>>, %arg5: memref<1x64xf32, #tpu.memory_space<vmem>>, %arg6: memref<64x128xbf16, #tpu.memory_space<vmem>>, %arg7: memref<1x128xf32, #tpu.memory_space<vmem>>, %arg8: memref<8x128xf32, #tpu.memory_space<vmem>>) attributes {dimension_semantics = [#tpu.dimension_semantics<parallel>], iteration_bounds = array<i64: 1>, scalar_prefetch = 0 : i64, scratch_operands = 0 : i64, tpu.core_type = #tpu.core_type<tc>, window_params = [{transform_indices = @transform_0, window_bounds = array<i64: 8, 16>}, {pipeline_mode = #tpu.pipeline_mode<synchronous>, transform_indices = @transform_1, window_bounds = array<i64: 16, 256>}, {pipeline_mode = #tpu.pipeline_mode<synchronous>, transform_indices = @transform_2, window_bounds = array<i64: 1, 256>}, {pipeline_mode = #tpu.pipeline_mode<synchronous>, transform_indices = @transform_3, window_bounds = array<i64: 256, 64>}, {pipeline_mode = #tpu.pipeline_mode<synchronous>, transform_indices = @transform_4, window_bounds = array<i64: 1, 64>}, {pipeline_mode = #tpu.pipeline_mode<synchronous>, transform_indices = @transform_5, window_bounds = array<i64: 64, 128>}, {pipeline_mode = #tpu.pipeline_mode<synchronous>, transform_indices = @transform_6, window_bounds = array<i64: 1, 128>}, {transform_indices = @transform_7, window_bounds = array<i64: 8, 128>}]} {
    %c0 = arith.constant 0 : index
    %c0_0 = arith.constant 0 : index
    %0 = vector.load %arg1[%c0, %c0_0] : memref<8x16xf32, #tpu.memory_space<vmem>>, vector<8x16xf32>
    %1 = arith.truncf %0 : vector<8x16xf32> to vector<8x16xbf16>
    %c0_1 = arith.constant 0 : index
    %c0_2 = arith.constant 0 : index
    %2 = vector.load %arg2[%c0_1, %c0_2] : memref<16x256xbf16, #tpu.memory_space<vmem>>, vector<16x256xbf16>
    %cst = arith.constant dense<0.000000e+00> : vector<8x256xf32>
    %3 = tpu.matmul %1, %2, %cst {dimension_numbers = #tpu.dot_dimension_numbers<[1], [0], [0], [1], [0, 0, 1, 1], [], []>} : vector<8x16xbf16>, vector<16x256xbf16>, vector<8x256xf32> -> vector<8x256xf32>
    %c0_3 = arith.constant 0 : index
    %c0_4 = arith.constant 0 : index
    %4 = vector.load %arg3[%c0_3, %c0_4] : memref<1x256xf32, #tpu.memory_space<vmem>>, vector<1x256xf32>
    %5 = vector.broadcast %4 : vector<1x256xf32> to vector<8x256xf32>
    %6 = arith.addf %3, %5 : vector<8x256xf32>
    %cst_5 = arith.constant 0.000000e+00 : f32
    %7 = vector.broadcast %cst_5 : f32 to vector<8x256xf32>
    %8 = arith.maximumf %6, %7 : vector<8x256xf32>
    %9 = arith.truncf %8 : vector<8x256xf32> to vector<8x256xbf16>
    %c0_6 = arith.constant 0 : index
    %c0_7 = arith.constant 0 : index
    %10 = vector.load %arg4[%c0_6, %c0_7] : memref<256x64xbf16, #tpu.memory_space<vmem>>, vector<256x64xbf16>
    %cst_8 = arith.constant dense<0.000000e+00> : vector<8x64xf32>
    %11 = tpu.matmul %9, %10, %cst_8 {dimension_numbers = #tpu.dot_dimension_numbers<[1], [0], [0], [1], [0, 0, 1, 1], [], []>} : vector<8x256xbf16>, vector<256x64xbf16>, vector<8x64xf32> -> vector<8x64xf32>
    %c0_9 = arith.constant 0 : index
    %c0_10 = arith.constant 0 : index
    %12 = vector.load %arg5[%c0_9, %c0_10] : memref<1x64xf32, #tpu.memory_space<vmem>>, vector<1x64xf32>
    %13 = vector.broadcast %12 : vector<1x64xf32> to vector<8x64xf32>
    %14 = arith.addf %11, %13 : vector<8x64xf32>
    %cst_11 = arith.constant 0.000000e+00 : f32
    %15 = vector.broadcast %cst_11 : f32 to vector<8x64xf32>
    %16 = arith.maximumf %14, %15 : vector<8x64xf32>
    %17 = arith.truncf %16 : vector<8x64xf32> to vector<8x64xbf16>
    %c0_12 = arith.constant 0 : index
    %c0_13 = arith.constant 0 : index
    %18 = vector.load %arg6[%c0_12, %c0_13] : memref<64x128xbf16, #tpu.memory_space<vmem>>, vector<64x128xbf16>
    %cst_14 = arith.constant dense<0.000000e+00> : vector<8x128xf32>
    %19 = tpu.matmul %17, %18, %cst_14 {dimension_numbers = #tpu.dot_dimension_numbers<[1], [0], [0], [1], [0, 0, 1, 1], [], []>} : vector<8x64xbf16>, vector<64x128xbf16>, vector<8x128xf32> -> vector<8x128xf32>
    %c0_15 = arith.constant 0 : index
    %c0_16 = arith.constant 0 : index
    %20 = vector.load %arg7[%c0_15, %c0_16] : memref<1x128xf32, #tpu.memory_space<vmem>>, vector<1x128xf32>
    %21 = vector.broadcast %20 : vector<1x128xf32> to vector<8x128xf32>
    %22 = arith.addf %19, %21 : vector<8x128xf32>
    %cst_17 = arith.constant 0.000000e+00 : f32
    %23 = vector.broadcast %cst_17 : f32 to vector<8x128xf32>
    %24 = arith.maximumf %22, %23 : vector<8x128xf32>
    %c0_18 = arith.constant 0 : index
    %c0_19 = arith.constant 0 : index
    %25 = vector.load %arg8[%c0_18, %c0_19] : memref<8x128xf32, #tpu.memory_space<vmem>>, vector<8x128xf32>
    tpu.vector_store %arg8[%c0_18, %c0_19], %24 {strides = array<i32>} : memref<8x128xf32, #tpu.memory_space<vmem>>, vector<8x128xf32>,
    return
  }
  func.func @transform_0(%arg0: i32) -> (i32, i32) {
    %c0_i32 = arith.constant 0 : i32
    %c0_i32_0 = arith.constant 0 : i32
    return %arg0, %c0_i32 : i32, i32
  }
  func.func @transform_1(%arg0: i32) -> (i32, i32) {
    %c0_i32 = arith.constant 0 : i32
    %c0_i32_0 = arith.constant 0 : i32
    %c0_i32_1 = arith.constant 0 : i32
    return %c0_i32, %c0_i32_0 : i32, i32
  }
  func.func @transform_2(%arg0: i32) -> (i32, i32) {
    %c0_i32 = arith.constant 0 : i32
    %c0_i32_0 = arith.constant 0 : i32
    %c0_i32_1 = arith.constant 0 : i32
    return %c0_i32, %c0_i32_0 : i32, i32
  }
  func.func @transform_3(%arg0: i32) -> (i32, i32) {
    %c0_i32 = arith.constant 0 : i32
    %c0_i32_0 = arith.constant 0 : i32
    %c0_i32_1 = arith.constant 0 : i32
    return %c0_i32, %c0_i32_0 : i32, i32
  }
  func.func @transform_4(%arg0: i32) -> (i32, i32) {
    %c0_i32 = arith.constant 0 : i32
    %c0_i32_0 = arith.constant 0 : i32
    %c0_i32_1 = arith.constant 0 : i32
    return %c0_i32, %c0_i32_0 : i32, i32
  }
  func.func @transform_5(%arg0: i32) -> (i32, i32) {
    %c0_i32 = arith.constant 0 : i32
    %c0_i32_0 = arith.constant 0 : i32
    %c0_i32_1 = arith.constant 0 : i32
    return %c0_i32, %c0_i32_0 : i32, i32
  }
  func.func @transform_6(%arg0: i32) -> (i32, i32) {
    %c0_i32 = arith.constant 0 : i32
    %c0_i32_0 = arith.constant 0 : i32
    %c0_i32_1 = arith.constant 0 : i32
    return %c0_i32, %c0_i32_0 : i32, i32
  }
  func.func @transform_7(%arg0: i32) -> (i32, i32) {
    %c0_i32 = arith.constant 0 : i32
    %c0_i32_0 = arith.constant 0 : i32
    return %arg0, %c0_i32 : i32, i32
  }
}

</mosaic_0001>

<llo_original>
// kernel: dnn_single_forward.1
$region0: #{dnn_single_forward.1}
  #allocation0 [shape = 'u32[]', space=smem, size = 0x4, offset = 0x4, fixed_abs, tag = 'smem constant byte address 0x4 - core index']
  #allocation1 [shape = 'u32[72,128]{1,0:T(1,128)}', space=vmem, size = 0x9000, scoped, tag = 'internal scratch']
  %s0 = inlined_call_operand.vmem [shape: f32[8,16], index: 0, kind: input, shape index: {}]
  %s1 = inlined_call_operand.vmem [shape: bf16[16,256], index: 1, kind: input, shape index: {}]
  %s2 = inlined_call_operand.vmem [shape: f32[1,256], index: 2, kind: input, shape index: {}]
  %s3 = inlined_call_operand.vmem [shape: bf16[256,64], index: 3, kind: input, shape index: {}]
  %s4 = inlined_call_operand.vmem [shape: f32[1,64], index: 4, kind: input, shape index: {}]
  %s5 = inlined_call_operand.vmem [shape: bf16[64,128], index: 5, kind: input, shape index: {}]
  %s6 = inlined_call_operand.vmem [shape: f32[1,128], index: 6, kind: input, shape index: {}]
  %s7 = inlined_call_operand.vmem [shape: f32[8,128], index: 7, kind: output, shape index: {}]
  %s8 = sld [smem:[#allocation0]]
  $region38: #{dnn_single_forward.1} parent=0
    _
  %s10 = ssub.s32 1, %s8
  %s11 = scalar_select 0, %s10, %s8
  // Predicated region
  $region2: #{dnn_single_forward.1} parent=0 // pred_check
    _
  $region3: #{dnn_single_forward.1} parent=0 // pred_check_branch
    %13 = sbr.rel (0) target = $region5
  $region4: #{dnn_single_forward.1} parent=0 // pred_region
    _
  $region5: #{dnn_single_forward.1} parent=0 // pred_fallthru
    _
  // Predicated region
  $region6: #{dnn_single_forward.1} parent=0 // pred_check
    _
  $region7: #{dnn_single_forward.1} parent=0 // pred_check_branch
    %15 = sbr.rel (0) target = $region9
  $region8: #{dnn_single_forward.1} parent=0 // pred_region
    _
  $region9: #{dnn_single_forward.1} parent=0 // pred_fallthru
    _
  // Predicated region
  $region10: #{dnn_single_forward.1} parent=0 // pred_check
    _
  $region11: #{dnn_single_forward.1} parent=0 // pred_check_branch
    %17 = sbr.rel (0) target = $region13
  $region12: #{dnn_single_forward.1} parent=0 // pred_region
    _
  $region13: #{dnn_single_forward.1} parent=0 // pred_fallthru
    _
  // Predicated region
  $region14: #{dnn_single_forward.1} parent=0 // pred_check
    _
  $region15: #{dnn_single_forward.1} parent=0 // pred_check_branch
    %19 = sbr.rel (0) target = $region17
  $region16: #{dnn_single_forward.1} parent=0 // pred_region
    _
  $region17: #{dnn_single_forward.1} parent=0 // pred_fallthru
    _
  // Predicated region
  $region18: #{dnn_single_forward.1} parent=0 // pred_check
    _
  $region19: #{dnn_single_forward.1} parent=0 // pred_check_branch
    %21 = sbr.rel (0) target = $region21
  $region20: #{dnn_single_forward.1} parent=0 // pred_region
    _
  $region21: #{dnn_single_forward.1} parent=0 // pred_fallthru
    _
  // Predicated region
  $region22: #{dnn_single_forward.1} parent=0 // pred_check
    _
  $region23: #{dnn_single_forward.1} parent=0 // pred_check_branch
    %23 = sbr.rel (0) target = $region25
  $region24: #{dnn_single_forward.1} parent=0 // pred_region
    _
  $region25: #{dnn_single_forward.1} parent=0 // pred_fallthru
    _
  // Predicated region
  $region26: #{dnn_single_forward.1} parent=0 // pred_check
    _
  $region27: #{dnn_single_forward.1} parent=0 // pred_check_branch
    %25 = sbr.rel (0) target = $region29
  $region28: #{dnn_single_forward.1} parent=0 // pred_region
    _
  $region29: #{dnn_single_forward.1} parent=0 // pred_fallthru
    _
  %v27 = vld [vmem:[%s0] sm:$0xff]
  %v28 = vpack.c.bf16 %v27, %v27
  %v29 = vld [vmem:[%s1] sm:$0xff]
  %v30 = vld [vmem:[%s1 + $0x8] sm:$0xff]
  %v31 = vld [vmem:[%s2] sm:$0x3]
  %v33 = vperm.slane %v31, 0
  %v34 = vperm.slane %v31, 1
  %v39 = vunpack.c.l.b16 %v29
  %v40 = vunpack.c.h.b16 %v29
  %v41 = vunpack.c.l.b16 %v30
  %v42 = vunpack.c.h.b16 %v30
  %v43 = vpack.c.b16 %v41, %v39
  %v44 = vpack.c.b16 %v42, %v40
  %vm47 = vcmask 130048
  %v49 = vsel %vm47, %v28, 0
  %51 = vmatpush.bf16.msra.mxu0 0
  %52 = vmatpush.bf16.msra.mxu0 0
  %53 = vmatpush.bf16.msra.mxu0 0
  %54 = vmatpush.bf16.msra.mxu0 0
  %55 = vmatpush.bf16.msra.mxu0 0
  %56 = vmatpush.bf16.msra.mxu0 0
  %57 = vmatpush.bf16.msra.mxu0 0
  %58 = vmatpush.bf16.msra.mxu0 %v43
  %59 = vmatmul.bf16.gmra.mxu0 %v49
  %v60 = vpop.f32.mrf.mxu0
  %v61 = vadd.f32 %v33, %v60
  %v62 = vpop.f32.mrf.mxu0
  %63 = vdwg.mxu0
  %64 = vmatpush.bf16.msra.mxu0 0
  %65 = vmatpush.bf16.msra.mxu0 0
  %66 = vmatpush.bf16.msra.mxu0 0
  %67 = vmatpush.bf16.msra.mxu0 0
  %68 = vmatpush.bf16.msra.mxu0 0
  %69 = vmatpush.bf16.msra.mxu0 0
  %70 = vmatpush.bf16.msra.mxu0 0
  %71 = vmatpush.bf16.msra.mxu0 %v44
  %72 = vmatmul.bf16.gmra.mxu0 %v49
  %v73 = vpop.f32.mrf.mxu0
  %v74 = vadd.f32 %v34, %v73
  %v75 = vpop.f32.mrf.mxu0
  %76 = vdwg.mxu0
  %v77 = vmax.f32 %v61, 0.0
  %v78 = vmax.f32 %v74, 0.0
  %v79 = vpack.c.bf16 %v77, %v77
  %v80 = vpack.c.bf16 %v78, %v78
  %v81 = vld [vmem:[%s3] sm:$0xf]
  %v82 = vld [vmem:[%s3 + $0x4] sm:$0xf]
  %v83 = vld [vmem:[%s3 + $0x8] sm:$0xf]
  %v84 = vld [vmem:[%s3 + $0xc] sm:$0xf]
  %v85 = vld [vmem:[%s3 + $0x10] sm:$0xf]
  %v86 = vld [vmem:[%s3 + $0x14] sm:$0xf]
  %v87 = vld [vmem:[%s3 + $0x18] sm:$0xf]
  %v88 = vld [vmem:[%s3 + $0x1c] sm:$0xf]
  %v89 = vld [vmem:[%s3 + $0x20] sm:$0xf]
  %v90 = vld [vmem:[%s3 + $0x24] sm:$0xf]
  %v91 = vld [vmem:[%s3 + $0x28] sm:$0xf]
  %v92 = vld [vmem:[%s3 + $0x2c] sm:$0xf]
  %v93 = vld [vmem:[%s3 + $0x30] sm:$0xf]
  %v94 = vld [vmem:[%s3 + $0x34] sm:$0xf]
  %v95 = vld [vmem:[%s3 + $0x38] sm:$0xf]
  %v96 = vld [vmem:[%s3 + $0x3c] sm:$0xf]
  %v97 = vld [vmem:[%s3 + $0x40] sm:$0xf]
  %v98 = vld [vmem:[%s3 + $0x44] sm:$0xf]
  %v99 = vld [vmem:[%s3 + $0x48] sm:$0xf]
  %v100 = vld [vmem:[%s3 + $0x4c] sm:$0xf]
  %v101 = vld [vmem:[%s3 + $0x50] sm:$0xf]
  %v102 = vld [vmem:[%s3 + $0x54] sm:$0xf]
  %v103 = vld [vmem:[%s3 + $0x58] sm:$0xf]
  %v104 = vld [vmem:[%s3 + $0x5c] sm:$0xf]
  %v105 = vld [vmem:[%s3 + $0x60] sm:$0xf]
  %v106 = vld [vmem:[%s3 + $0x64] sm:$0xf]
  %v107 = vld [vmem:[%s3 + $0x68] sm:$0xf]
  %v108 = vld [vmem:[%s3 + $0x6c] sm:$0xf]
  %v109 = vld [vmem:[%s3 + $0x70] sm:$0xf]
  %v110 = vld [vmem:[%s3 + $0x74] sm:$0xf]
  %v111 = vld [vmem:[%s3 + $0x78] sm:$0xf]
  %v112 = vld [vmem:[%s3 + $0x7c] sm:$0xf]
  %v113 = vld [vmem:[%s4] sm:$0x1]
  %v115 = vperm.slane %v113, 0
  %v149 = vunpack.c.l.b16 %v81
  %v150 = vunpack.c.l.b16 %v82
  %v151 = vunpack.c.l.b16 %v83
  %v152 = vunpack.c.l.b16 %v84
  %v153 = vunpack.c.l.b16 %v85
  %v154 = vunpack.c.l.b16 %v86
  %v155 = vunpack.c.l.b16 %v87
  %v156 = vunpack.c.l.b16 %v88
  %v157 = vunpack.c.l.b16 %v89
  %v158 = vunpack.c.l.b16 %v90
  %v159 = vunpack.c.l.b16 %v91
  %v160 = vunpack.c.l.b16 %v92
  %v161 = vunpack.c.l.b16 %v93
  %v162 = vunpack.c.l.b16 %v94
  %v163 = vunpack.c.l.b16 %v95
  %v164 = vunpack.c.l.b16 %v96
  %v165 = vunpack.c.l.b16 %v97
  %v166 = vunpack.c.l.b16 %v98
  %v167 = vunpack.c.l.b16 %v99
  %v168 = vunpack.c.l.b16 %v100
  %v169 = vunpack.c.l.b16 %v101
  %v170 = vunpack.c.l.b16 %v102
  %v171 = vunpack.c.l.b16 %v103
  %v172 = vunpack.c.l.b16 %v104
  %v173 = vunpack.c.l.b16 %v105
  %v174 = vunpack.c.l.b16 %v106
  %v175 = vunpack.c.l.b16 %v107
  %v176 = vunpack.c.l.b16 %v108
  %v177 = vunpack.c.l.b16 %v109
  %v178 = vunpack.c.l.b16 %v110
  %v179 = vunpack.c.l.b16 %v111
  %v180 = vunpack.c.l.b16 %v112
  %v181 = vpack.c.b16 %v150, %v149
  %v182 = vpack.c.b16 %v152, %v151
  %v183 = vpack.c.b16 %v154, %v153
  %v184 = vpack.c.b16 %v156, %v155
  %v185 = vpack.c.b16 %v158, %v157
  %v186 = vpack.c.b16 %v160, %v159
  %v187 = vpack.c.b16 %v162, %v161
  %v188 = vpack.c.b16 %v164, %v163
  %v189 = vpack.c.b16 %v166, %v165
  %v190 = vpack.c.b16 %v168, %v167
  %v191 = vpack.c.b16 %v170, %v169
  %v192 = vpack.c.b16 %v172, %v171
  %v193 = vpack.c.b16 %v174, %v173
  %v194 = vpack.c.b16 %v176, %v175
  %v195 = vpack.c.b16 %v178, %v177
  %v196 = vpack.c.b16 %v180, %v179
  %213 = vmatpush.bf16.msra.mxu0 %v188
  %214 = vmatpush.bf16.msra.mxu0 %v187
  %215 = vmatpush.bf16.msra.mxu0 %v186
  %216 = vmatpush.bf16.msra.mxu0 %v185
  %217 = vmatpush.bf16.msra.mxu0 %v184
  %218 = vmatpush.bf16.msra.mxu0 %v183
  %219 = vmatpush.bf16.msra.mxu0 %v182
  %220 = vmatpush.bf16.msra.mxu0 %v181
  %221 = vmatmul.bf16.gmra.mxu0 %v79
  %v222 = vpop.f32.mrf.mxu0
  %v223 = vadd.f32 %v115, %v222
  %v224 = vpop.f32.mrf.mxu0
  %225 = vdwg.mxu0
  %226 = vmatpush.bf16.msra.mxu0 %v196
  %227 = vmatpush.bf16.msra.mxu0 %v195
  %228 = vmatpush.bf16.msra.mxu0 %v194
  %229 = vmatpush.bf16.msra.mxu0 %v193
  %230 = vmatpush.bf16.msra.mxu0 %v192
  %231 = vmatpush.bf16.msra.mxu0 %v191
  %232 = vmatpush.bf16.msra.mxu0 %v190
  %233 = vmatpush.bf16.msra.mxu0 %v189
  %234 = vmatmul.bf16.gmra.mxu0 %v80
  %v235 = vpop.f32.mrf.mxu0
  %v236 = vadd.f32 %v223, %v235
  %v237 = vpop.f32.mrf.mxu0
  %238 = vdwg.mxu0
  %v239 = vmax.f32 %v236, 0.0
  %v240 = vpack.c.bf16 %v239, %v239
  %v241 = vld [vmem:[%s5] sm:$0xf]
  %v242 = vld [vmem:[%s5 + $0x4] sm:$0xf]
  %v243 = vld [vmem:[%s5 + $0x8] sm:$0xf]
  %v244 = vld [vmem:[%s5 + $0xc] sm:$0xf]
  %v245 = vld [vmem:[%s5 + $0x10] sm:$0xf]
  %v246 = vld [vmem:[%s5 + $0x14] sm:$0xf]
  %v247 = vld [vmem:[%s5 + $0x18] sm:$0xf]
  %v248 = vld [vmem:[%s5 + $0x1c] sm:$0xf]
  %v249 = vld [vmem:[%s6] sm:$0x1]
  %v251 = vperm.slane %v249, 0
  %v261 = vunpack.c.l.b16 %v241
  %v262 = vunpack.c.l.b16 %v242
  %v263 = vunpack.c.l.b16 %v243
  %v264 = vunpack.c.l.b16 %v244
  %v265 = vunpack.c.l.b16 %v245
  %v266 = vunpack.c.l.b16 %v246
  %v267 = vunpack.c.l.b16 %v247
  %v268 = vunpack.c.l.b16 %v248
  %v269 = vpack.c.b16 %v262, %v261
  %v270 = vpack.c.b16 %v264, %v263
  %v271 = vpack.c.b16 %v266, %v265
  %v272 = vpack.c.b16 %v268, %v267
  %vm277 = vcmask 523264
  %v279 = vsel %vm277, %v240, 0
  %281 = vmatpush.bf16.msra.mxu0 0
  %282 = vmatpush.bf16.msra.mxu0 0
  %283 = vmatpush.bf16.msra.mxu0 0
  %284 = vmatpush.bf16.msra.mxu0 0
  %285 = vmatpush.bf16.msra.mxu0 %v272
  %286 = vmatpush.bf16.msra.mxu0 %v271
  %287 = vmatpush.bf16.msra.mxu0 %v270
  %288 = vmatpush.bf16.msra.mxu0 %v269
  %289 = vmatmul.bf16.gmra.mxu0 %v279
  %v290 = vpop.f32.mrf.mxu0
  %v291 = vadd.f32 %v251, %v290
  %v292 = vpop.f32.mrf.mxu0
  %293 = vdwg.mxu0
  %v294 = vmax.f32 %v291, 0.0
  %295 = vst [vmem:[%s7] sm:$0xff] %v294
  // Predicated region
  $region30: #{dnn_single_forward.1} parent=0 // pred_check
    _
  $region31: #{dnn_single_forward.1} parent=0 // pred_check_branch
    %297 = sbr.rel (0) target = $region33
  $region32: #{dnn_single_forward.1} parent=0 // pred_region
    _
  $region33: #{dnn_single_forward.1} parent=0 // pred_fallthru
    _
  // Predicated region
  $region34: #{dnn_single_forward.1} parent=0 // pred_check
    _
  $region35: #{dnn_single_forward.1} parent=0 // pred_check_branch
    %299 = sbr.rel (0) target = $region37
  $region36: #{dnn_single_forward.1} parent=0 // pred_region
    _
  $region37: #{dnn_single_forward.1} parent=0 // pred_fallthru
    _

</llo_original>
